<compile_context>
chip_gen: v7x
topology: tpu7x:2x2x1
jax: 0.10.0
libtpu: 0.0.40
codegen_flags: <defaults>
</compile_context>

<pallas_src>
import jax
import jax.numpy as jnp
from jax import lax
from jax.experimental import pallas as pl
from jax.experimental.pallas import tpu as pltpu

LANE = 128
SUBLANE = 8
_MIB = 1 << 20
_TARGET_TILE_BYTES = 2 * _MIB  # ~2 MiB of HBM data per streamed input tile


# ---------------------------------------------------------------------------
# Small helpers (wrapper glue)
# ---------------------------------------------------------------------------
def _round_up(v, m):
    return ((v + m - 1) // m) * m


def _fit_tile(budget, dim, unit):
    """Largest tile <= dim that is either the full dim or a multiple of unit."""
    if budget >= dim:
        return dim
    t = max(unit, (budget // unit) * unit)
    return dim if t >= dim else t


def _num_tensorcores() -> int:
    """Best-effort TensorCores-per-device (megacore / v7x sharding width)."""
    try:
        dev = jax.devices()[0]
        if dev.platform != "tpu":
            return 1
        kind = (getattr(dev, "device_kind", "") or "").lower()
        # v5e / v6e ("lite") chips expose a single TensorCore per device.
        if "lite" in kind or "v5e" in kind or "v6e" in kind:
            return 1
        # v4/v5p megacore and v7x expose 2 TensorCores per device.  Being
        # wrong here only costs (at most) one duplicated, masked-out tile.
        return 2
    except Exception:
        return 1


def _vmem_limit(n_streams, tile_bytes):
    """Scoped-VMEM request: double-buffered streams + f32 temps + headroom."""
    need = n_streams * 2 * tile_bytes + 4 * tile_bytes + 2 * _MIB
    return int(min(max(need, 32 * _MIB), 100 * _MIB))


def _split(n_parallel, n_reduce, n_cores):
    """How many ways to split the reduction axis across TensorCores."""
    if n_cores > 1 and n_parallel < n_cores and n_reduce >= 2:
        n_splits = min(n_cores, n_reduce)
    else:
        n_splits = 1
    return n_splits, pl.cdiv(n_reduce, n_splits)


def _tiling_2d(B, F, itemsize, target_bytes):
    """Block sizes for the natural (B, F) view (VMEM charged at >=8 sublanes)."""
    tile_b = _fit_tile(target_bytes // (LANE * itemsize), B, SUBLANE)
    pad_b = _round_up(tile_b, SUBLANE)
    tile_f = _fit_tile(target_bytes // max(1, pad_b * itemsize), F, LANE)
    return tile_b, tile_f


# ---------------------------------------------------------------------------
# Kernels
# ---------------------------------------------------------------------------
def _loss_kernel(x_ref, t_ref, o_ref):
    """Elementwise squared error (reduction == 'none')."""
    d = x_ref[...].astype(jnp.float32) - t_ref[...].astype(jnp.float32)
    o_ref[...] = (d * d).astype(o_ref.dtype)


def _make_sum_kernel_packed(n_rows, tile_r, tiles_per_split, need_mask):
    """Per-sample SSE over a (B, R, 128) row-packed view, lane-dense scratch."""

    def kernel(x_ref, t_ref, out_ref, acc_ref):
        p = pl.program_id(1)   # feature split (megacore)
        j = pl.program_id(2)   # feature-row tile within the split

        @pl.when(j == 0)
        def _():
            acc_ref[...] = jnp.zeros_like(acc_ref)

        d = x_ref[...].astype(jnp.float32) - t_ref[...].astype(jnp.float32)
        sq = d * d                                     # (tile_b, tile_r, 128)
        if need_mask:
            # Logical (unclamped) first feature-row of this tile.  Rows >= R
            # are ragged-tail garbage or a duplicated clamped tile -> zeroed.
            row0 = (p * tiles_per_split + j) * tile_r
            row = lax.broadcasted_iota(jnp.int32, sq.shape, 1) + row0
            sq = jnp.where(row < n_rows, sq, 0.0)
        # Feature-row reduce: VPU adds across vreg slabs + one sublane reduce;
        # the accumulator stays lane-dense (tile_b, 128) in VMEM scratch.
        acc_ref[...] += jnp.sum(sq, axis=1)

        @pl.when(j == tiles_per_split - 1)
        def _():
            out_ref[...] = jnp.sum(acc_ref[...], axis=1, keepdims=True)[None]

    return kernel


def _make_sum_kernel_ragged(n_cols, tile_f, tiles_per_split, need_mask):
    """Per-sample SSE over the natural (B, F) view (F not a multiple of 128)."""

    def kernel(x_ref, t_ref, out_ref):
        p = pl.program_id(1)
        j = pl.program_id(2)

        @pl.when(j == 0)
        def _():
            out_ref[...] = jnp.zeros_like(out_ref)

        d = x_ref[...].astype(jnp.float32) - t_ref[...].astype(jnp.float32)
        sq = d * d                                     # (tile_b, tile_f)
        if need_mask:
            col0 = (p * tiles_per_split + j) * tile_f
            col = lax.broadcasted_iota(jnp.int32, sq.shape, 1) + col0
            sq = jnp.where(col < n_cols, sq, 0.0)
        out_ref[...] += jnp.sum(sq, axis=1, keepdims=True)[None]

    return kernel


# ---------------------------------------------------------------------------
# pallas_call wrappers
# ---------------------------------------------------------------------------
def _sample_sums_packed(x2d, t2d, target_bytes, n_cores):
    """(B,) f32 per-sample SSE when F is a multiple of 128 (free row packing)."""
    B, F = x2d.shape
    itemsize = x2d.dtype.itemsize
    R = F // LANE
    xr = x2d.reshape(B, R, LANE)   # free reshape: no HBM pass
    tr = t2d.reshape(B, R, LANE)

    row_bytes = LANE * itemsize
    tile_b = _fit_tile(target_bytes // (SUBLANE * row_bytes), B, SUBLANE)
    tile_r = _fit_tile(target_bytes // max(1, tile_b * row_bytes), R, SUBLANE)

    n_b = pl.cdiv(B, tile_b)
    n_r = pl.cdiv(R, tile_r)
    n_splits, tiles_per_split = _split(n_b, n_r, n_cores)
    overrun = n_splits * tiles_per_split > n_r
    need_mask = n_splits * tiles_per_split * tile_r > R

    def in_map(i, p, j):
        jt = p * tiles_per_split + j
        if overrun:
            jt = jnp.minimum(jt, n_r - 1)   # never DMA past the array
        return (i, jt, 0)

    kernel = _make_sum_kernel_packed(R, tile_r, tiles_per_split, need_mask)
    tile_bytes = tile_b * tile_r * LANE * itemsize

    part = pl.pallas_call(
        kernel,
        out_shape=jax.ShapeDtypeStruct((n_splits, B, 1), jnp.float32),
        grid_spec=pltpu.PrefetchScalarGridSpec(
            num_scalar_prefetch=0,
            grid=(n_b, n_splits, tiles_per_split),
            in_specs=[
                pl.BlockSpec((tile_b, tile_r, LANE), in_map),
                pl.BlockSpec((tile_b, tile_r, LANE), in_map),
            ],
            out_specs=pl.BlockSpec((1, tile_b, 1), lambda i, p, j: (p, i, 0)),
            scratch_shapes=[pltpu.VMEM((tile_b, LANE), jnp.float32)],
        ),
        compiler_params=pltpu.CompilerParams(
            dimension_semantics=("parallel", "parallel", "arbitrary"),
            vmem_limit_bytes=_vmem_limit(2, tile_bytes),
        ),
        cost_estimate=pl.CostEstimate(
            flops=3 * B * F, transcendentals=0,
            bytes_accessed=2 * B * F * itemsize),
    )(xr, tr)

    return jnp.sum(part, axis=(0, 2))  # combine splits: O(n_splits*B) glue


def _sample_sums_ragged(x2d, t2d, target_bytes, n_cores):
    """(B,) f32 per-sample SSE for F not a multiple of 128 (no padding pass)."""
    B, F = x2d.shape
    itemsize = x2d.dtype.itemsize

    tile_b, tile_f = _tiling_2d(B, F, itemsize, target_bytes)
    n_b = pl.cdiv(B, tile_b)
    n_f = pl.cdiv(F, tile_f)
    n_splits, tiles_per_split = _split(n_b, n_f, n_cores)
    overrun = n_splits * tiles_per_split > n_f
    need_mask = n_splits * tiles_per_split * tile_f > F

    def in_map(i, p, j):
        jt = p * tiles_per_split + j
        if overrun:
            jt = jnp.minimum(jt, n_f - 1)
        return (i, jt)

    kernel = _make_sum_kernel_ragged(F, tile_f, tiles_per_split, need_mask)
    tile_bytes = _round_up(tile_b, SUBLANE) * tile_f * itemsize

    part = pl.pallas_call(
        kernel,
        out_shape=jax.ShapeDtypeStruct((n_splits, B, 1), jnp.float32),
        grid_spec=pltpu.PrefetchScalarGridSpec(
            num_scalar_prefetch=0,
            grid=(n_b, n_splits, tiles_per_split),
            in_specs=[
                pl.BlockSpec((tile_b, tile_f), in_map),
                pl.BlockSpec((tile_b, tile_f), in_map),
            ],
            out_specs=pl.BlockSpec((1, tile_b, 1), lambda i, p, j: (p, i, 0)),
        ),
        compiler_params=pltpu.CompilerParams(
            dimension_semantics=("parallel", "parallel", "arbitrary"),
            vmem_limit_bytes=_vmem_limit(2, tile_bytes),
        ),
        cost_estimate=pl.CostEstimate(
            flops=3 * B * F, transcendentals=0,
            bytes_accessed=2 * B * F * itemsize),
    )(x2d, t2d)

    return jnp.sum(part, axis=(0, 2))


def _sample_sums(x2d, t2d, target_bytes, n_cores):
    if x2d.shape[1] % LANE == 0:
        return _sample_sums_packed(x2d, t2d, target_bytes, n_cores)
    return _sample_sums_ragged(x2d, t2d, target_bytes, n_cores)


def _elementwise_loss(x2d, t2d, target_bytes):
    """Full (B, F) elementwise squared error (reduction == 'none')."""
    B, F = x2d.shape
    itemsize = x2d.dtype.itemsize
    # f32 compute; floating inputs keep their dtype, integer inputs -> f32.
    out_dtype = x2d.dtype if jnp.issubdtype(x2d.dtype, jnp.floating) else jnp.float32
    total = B * F
    cost = pl.CostEstimate(
        flops=2 * total, transcendentals=0,
        bytes_accessed=(2 * itemsize + jnp.dtype(out_dtype).itemsize) * total)

    if total % LANE == 0:
        # Lane-dense flattened view: one fully contiguous DMA per tile; an
        # elementwise map needs no per-sample block structure.
        rows = total // LANE
        xr = x2d.reshape(rows, LANE)
        tr = t2d.reshape(rows, LANE)
        tile_r = _fit_tile(target_bytes // (LANE * itemsize), rows, SUBLANE)
        tile_bytes = tile_r * LANE * itemsize
        loss = pl.pallas_call(
            _loss_kernel,
            out_shape=jax.ShapeDtypeStruct((rows, LANE), out_dtype),
            grid_spec=pltpu.PrefetchScalarGridSpec(
                num_scalar_prefetch=0,
                grid=(pl.cdiv(rows, tile_r),),
                in_specs=[pl.BlockSpec((tile_r, LANE), lambda i: (i, 0)),
                          pl.BlockSpec((tile_r, LANE), lambda i: (i, 0))],
                out_specs=pl.BlockSpec((tile_r, LANE), lambda i: (i, 0)),
            ),
            compiler_params=pltpu.CompilerParams(
                dimension_semantics=("parallel",),
                vmem_limit_bytes=_vmem_limit(3, tile_bytes),
            ),
            cost_estimate=cost,
        )(xr, tr)
        return loss.reshape(B, F)

    # Ragged total: tile the natural (B, F) view; out-of-range edge-block
    # writes are dropped by Pallas, so no pad / slice HBM passes are needed.
    tile_b, tile_f = _tiling_2d(B, F, itemsize, target_bytes)
    tile_bytes = _round_up(tile_b, SUBLANE) * tile_f * itemsize
    loss = pl.pallas_call(
        _loss_kernel,
        out_shape=jax.ShapeDtypeStruct((B, F), out_dtype),
        grid_spec=pltpu.PrefetchScalarGridSpec(
            num_scalar_prefetch=0,
            grid=(pl.cdiv(B, tile_b), pl.cdiv(F, tile_f)),
            in_specs=[pl.BlockSpec((tile_b, tile_f), lambda i, j: (i, j)),
                      pl.BlockSpec((tile_b, tile_f), lambda i, j: (i, j))],
            out_specs=pl.BlockSpec((tile_b, tile_f), lambda i, j: (i, j)),
        ),
        compiler_params=pltpu.CompilerParams(
            dimension_semantics=("parallel", "parallel"),
            vmem_limit_bytes=_vmem_limit(3, tile_bytes),
        ),
        cost_estimate=cost,
    )(x2d, t2d)
    return loss


# ---------------------------------------------------------------------------
# Module
# ---------------------------------------------------------------------------
class Criterion:
    """JAX/Pallas port of zenkai.kaku._assess.Criterion (squared-error base)."""

    def __init__(self, reduction: str = "mean", maximize: bool = False,
                 target_tile_bytes: int = _TARGET_TILE_BYTES):
        self.reduction = reduction
        self._maximize = maximize
        self._target_tile_bytes = int(target_tile_bytes)
        self._n_cores = _num_tensorcores()

    @property
    def maximize(self) -> bool:
        return self._maximize

    def forward(self, x: jax.Array, t: jax.Array, reduction_override: str = None):
        # Reduction-selection semantics mirror Criterion.reduce():
        # 'none' as the default reduction cannot be overridden.
        if self.reduction == "none" or reduction_override is None:
            reduction = self.reduction
        else:
            reduction = reduction_override

        B = x.shape[0]
        x2d = x.reshape(B, -1)
        t2d = t.reshape(B, -1)
        F = x2d.shape[1]

        if reduction == "none":
            # Only this mode materializes the full elementwise loss.
            return _elementwise_loss(x2d, t2d, self._target_tile_bytes).reshape(x.shape)

        sample_sums = _sample_sums(x2d, t2d, self._target_tile_bytes,
                                   self._n_cores)  # (B,) f32

        if reduction == "samplesums":
            return sample_sums
        if reduction == "samplemeans":
            return sample_sums / F

        total = jnp.sum(sample_sums)  # O(B) fold — glue
        if reduction == "sum":
            return total
        if reduction == "mean":
            return total / (B * F)
        if reduction == "batchmean":
            return total / B
        raise ValueError(f"{reduction} cannot be reduced.")

    def assess(self, x, t, reduction_override=None):
        return self.forward(x, t, reduction_override)

    __call__ = forward


if __name__ == "__main__":
    key = jax.random.PRNGKey(0)
    kx, kt = jax.random.split(key)

    # NCHW inputs: batch=2, channels=4, spatial=16x16  ->  F = 1024
    x = jax.random.normal(kx, (2, 4, 16, 16), dtype=jnp.float32)
    t = jax.random.normal(kt, (2, 4, 16, 16), dtype=jnp.float32)

    crit = Criterion(reduction="mean")

    # Pure-JAX reference for every reduction mode.
    ref_elem = (x - t) ** 2
    B = x.shape[0]
    F = ref_elem.reshape(B, -1).shape[1]
    refs = {
        "mean": jnp.mean(ref_elem),
        "sum": jnp.sum(ref_elem),
        "none": ref_elem,
        "batchmean": jnp.sum(ref_elem) / B,
        "samplemeans": jnp.mean(ref_elem.reshape(B, -1), axis=1),
        "samplesums": jnp.sum(ref_elem.reshape(B, -1), axis=1),
    }

    ok = True
    out = jax.block_until_ready(crit(x, t))                     # default: mean
    ok &= bool(jnp.allclose(out, refs["mean"], atol=1e-5, rtol=1e-5))
    for red in ("sum", "none", "batchmean", "samplemeans", "samplesums"):
        out = jax.block_until_ready(crit(x, t, reduction_override=red))
        ok &= bool(jnp.allclose(out, refs[red], atol=1e-4, rtol=1e-4))

    # Ragged feature count (F = 252, not a multiple of 128): exercises the
    # pad-free ragged paths (in-kernel mask / edge-block writes).
    xr_ = jax.random.normal(kx, (2, 4, 7, 9), dtype=jnp.float32)
    tr_ = jax.random.normal(kt, (2, 4, 7, 9), dtype=jnp.float32)
    ref_r = (xr_ - tr_) ** 2
    out = jax.block_until_ready(crit(xr_, tr_, reduction_override="samplesums"))
    ok &= bool(jnp.allclose(out, jnp.sum(ref_r.reshape(2, -1), axis=1),
                            atol=1e-4, rtol=1e-4))
    out = jax.block_until_ready(crit(xr_, tr_, reduction_override="none"))
    ok &= bool(jnp.allclose(out, ref_r, atol=1e-5, rtol=1e-5))

    # Multi-tile + forced 2-way split with an odd tile count: exercises the
    # clamped index map, the row mask and the scratch accumulator.
    xs = jax.random.normal(kx, (2, 24576), dtype=jnp.float32)
    ts = jax.random.normal(kt, (2, 24576), dtype=jnp.float32)
    ssum = jax.block_until_ready(_sample_sums_packed(xs, ts, 64 * 1024, 2))
    ok &= bool(jnp.allclose(ssum, jnp.sum((xs - ts) ** 2, axis=1),
                            atol=1e-3, rtol=1e-4))

    print("KERNEL_OK" if ok else "KERNEL_MISMATCH")
</pallas_src>

<mosaic_0001>
module attributes {stable_mosaic.version = 11 : i64} {
  func.func @kernel(%arg0: i32, %arg1: i32, %arg2: i32, %arg3: memref<2x8x128xf32, #tpu.memory_space<vmem>>, %arg4: memref<2x8x128xf32, #tpu.memory_space<vmem>>, %arg5: memref<1x2x1xf32, #tpu.memory_space<vmem>>, %arg6: memref<2x128xf32, #tpu.memory_space<vmem>>) attributes {dimension_semantics = [#tpu.dimension_semantics<parallel>, #tpu.dimension_semantics<parallel>, #tpu.dimension_semantics<arbitrary>], iteration_bounds = array<i64: 1, 1, 1>, scalar_prefetch = 0 : i64, scratch_operands = 1 : i64, tpu.core_type = #tpu.core_type<tc>, window_params = [{transform_indices = @transform_0, window_bounds = array<i64: 2, 8, 128>}, {transform_indices = @transform_1, window_bounds = array<i64: 2, 8, 128>}, {transform_indices = @transform_2, window_bounds = array<i64: 1, 2, 1>}]} {
    %c0_i32 = arith.constant 0 : i32
    %0 = arith.cmpi eq, %arg2, %c0_i32 : i32
    %1 = arith.extui %0 : i1 to i32
    %c0_i32_0 = arith.constant 0 : i32
    %2 = arith.cmpi ne, %1, %c0_i32_0 : i32
    scf.if %2 {
      %cst_12 = arith.constant 0.000000e+00 : f32
      %14 = vector.broadcast %cst_12 : f32 to vector<2x128xf32>
      %c0_13 = arith.constant 0 : index
      %c0_14 = arith.constant 0 : index
      %15 = vector.load %arg6[%c0_13, %c0_14] : memref<2x128xf32, #tpu.memory_space<vmem>>, vector<2x128xf32>
      tpu.vector_store %arg6[%c0_13, %c0_14], %14 {strides = array<i32>} : memref<2x128xf32, #tpu.memory_space<vmem>>, vector<2x128xf32>,
    } else {
    }
    %c0 = arith.constant 0 : index
    %c0_1 = arith.constant 0 : index
    %c0_2 = arith.constant 0 : index
    %3 = vector.load %arg3[%c0, %c0_1, %c0_2] : memref<2x8x128xf32, #tpu.memory_space<vmem>>, vector<2x8x128xf32>
    %c0_3 = arith.constant 0 : index
    %c0_4 = arith.constant 0 : index
    %c0_5 = arith.constant 0 : index
    %4 = vector.load %arg4[%c0_3, %c0_4, %c0_5] : memref<2x8x128xf32, #tpu.memory_space<vmem>>, vector<2x8x128xf32>
    %5 = arith.subf %3, %4 : vector<2x8x128xf32>
    %6 = arith.mulf %5, %5 : vector<2x8x128xf32>
    %c0_6 = arith.constant 0 : index
    %c0_7 = arith.constant 0 : index
    %7 = vector.load %arg6[%c0_6, %c0_7] : memref<2x128xf32, #tpu.memory_space<vmem>>, vector<2x128xf32>
    %cst = arith.constant dense<0.000000e+00> : vector<2x128xf32>
    %8 = vector.multi_reduction <add>, %6, %cst [1] : vector<2x8x128xf32> to vector<2x128xf32>
    %9 = arith.addf %7, %8 : vector<2x128xf32>
    %c0_8 = arith.constant 0 : index
    %c0_9 = arith.constant 0 : index
    %10 = vector.load %arg6[%c0_8, %c0_9] : memref<2x128xf32, #tpu.memory_space<vmem>>, vector<2x128xf32>
    tpu.vector_store %arg6[%c0_8, %c0_9], %9 {strides = array<i32>} : memref<2x128xf32, #tpu.memory_space<vmem>>, vector<2x128xf32>,
    %c0_i32_10 = arith.constant 0 : i32
    %11 = arith.cmpi eq, %arg2, %c0_i32_10 : i32
    %12 = arith.extui %11 : i1 to i32
    %c0_i32_11 = arith.constant 0 : i32
    %13 = arith.cmpi ne, %12, %c0_i32_11 : i32
    scf.if %13 {
      %c0_12 = arith.constant 0 : index
      %c0_13 = arith.constant 0 : index
      %14 = vector.load %arg6[%c0_12, %c0_13] : memref<2x128xf32, #tpu.memory_space<vmem>>, vector<2x128xf32>
      %cst_14 = arith.constant dense<0.000000e+00> : vector<2xf32>
      %15 = vector.multi_reduction <add>, %14, %cst_14 [1] : vector<2x128xf32> to vector<2xf32>
      %16 = vector.shape_cast %15 : vector<2xf32> to vector<2x1xf32>
      %17 = vector.shape_cast %16 : vector<2x1xf32> to vector<1x2x1xf32>
      %c0_15 = arith.constant 0 : index
      %c0_16 = arith.constant 0 : index
      %c0_17 = arith.constant 0 : index
      %18 = vector.load %arg5[%c0_15, %c0_16, %c0_17] : memref<1x2x1xf32, #tpu.memory_space<vmem>>, vector<1x2x1xf32>
      tpu.vector_store %arg5[%c0_15, %c0_16, %c0_17], %17 {strides = array<i32>} : memref<1x2x1xf32, #tpu.memory_space<vmem>>, vector<1x2x1xf32>,
    } else {
    }
    return
  }
  func.func @transform_0(%arg0: i32, %arg1: i32, %arg2: i32) -> (i32, i32, i32) {
    %c1_i32 = arith.constant 1 : i32
    %0 = arith.muli %arg1, %c1_i32 : i32
    %1 = arith.addi %0, %arg2 : i32
    %c0_i32 = arith.constant 0 : i32
    %c0_i32_0 = arith.constant 0 : i32
    return %arg0, %1, %c0_i32 : i32, i32, i32
  }
  func.func @transform_1(%arg0: i32, %arg1: i32, %arg2: i32) -> (i32, i32, i32) {
    %c1_i32 = arith.constant 1 : i32
    %0 = arith.muli %arg1, %c1_i32 : i32
    %1 = arith.addi %0, %arg2 : i32
    %c0_i32 = arith.constant 0 : i32
    %c0_i32_0 = arith.constant 0 : i32
    return %arg0, %1, %c0_i32 : i32, i32, i32
  }
  func.func @transform_2(%arg0: i32, %arg1: i32, %arg2: i32) -> (i32, i32, i32) {
    %c0_i32 = arith.constant 0 : i32
    %c0_i32_0 = arith.constant 0 : i32
    return %arg1, %arg0, %c0_i32 : i32, i32, i32
  }
}

</mosaic_0001>

<llo_original>
// kernel: tpu_custom_call.1
$region0: #{tpu_custom_call.1}
  #allocation0 [shape = 'u32[]', space=smem, size = 0x4, offset = 0x4, fixed_abs, tag = 'smem constant byte address 0x4 - core index']
  #allocation1 [shape = 'u32[144,128]{1,0:T(1,128)}', space=vmem, size = 0x12000, scoped, tag = 'internal scratch']
  #allocation2 [shape = 'f32[2,128]{1,0:T(2,128)}', space=vmem, size = 0x400, scoped, tag = 'scratch operand']
  %s0 = inlined_call_operand.hbm [shape: f32[2,8,128], index: 0, kind: input, shape index: {}]
  %s1 = inlined_call_operand.hbm [shape: f32[2,8,128], index: 1, kind: input, shape index: {}]
  %s2 = inlined_call_operand.vmem [shape: f32[1,2,1], index: 2, kind: output, shape index: {}]
  %s3 = sld [smem:[#allocation0]]
  $region34: #{tpu_custom_call.1} parent=0
    _
  %s5 = ssub.s32 1, %s3
  %s6 = scalar_select 0, %s5, %s3
  $region1: #{tpu_custom_call.1} parent=0
    #allocation3 [shape = 'u8[8192]{0}', space=vmem, size = 0x2000, scoped, tag = 'input window, operand 0, single buffered']
    #allocation4 [shape = 's32[1]{0}', space=sflag, size = 0x4, scoped, tag = 'scoped memory for tpu_custom_call.1']
    #allocation5 [shape = 'u8[8192]{0}', space=vmem, size = 0x2000, scoped, tag = 'input window, operand 1, single buffered']
    #allocation6 [shape = 's32[1]{0}', space=sflag, size = 0x4, scoped, tag = 'scoped memory for tpu_custom_call.1']
    %7 = vsyncpa [#allocation4], 0
    %8 = vsyncpa [#allocation6], 0
    // Predicated region
    $region2: #{tpu_custom_call.1} parent=1 // pred_check
      _
    $region3: #{tpu_custom_call.1} parent=1 // pred_check_branch
      %10 = sbr.rel (0) target = $region5
    $region4: #{tpu_custom_call.1} parent=1 // pred_region
      %s11 = sadd.s32 0, 0
      %s13 = ssub.s32 256, 256
      %14 = vsyncadd [#allocation4], %s13
      %s15 = smul.addr %s11, 128
      %s16 = scalar_lea.hbm %s0, %s15
      %s17 = sshll.u32 [#allocation3], 4
      %s18 = int_to_ptr.vmem [resolvable:$true] %s17
      %23 = dma.hbm_to_vmem [thread:$0]  %s16, 256, %s18, [#allocation4], 128, 128, 8
    $region5: #{tpu_custom_call.1} parent=1 // pred_fallthru
      _
    // Predicated region
    $region6: #{tpu_custom_call.1} parent=1 // pred_check
      _
    $region7: #{tpu_custom_call.1} parent=1 // pred_check_branch
      %25 = sbr.rel (0) target = $region9
    $region8: #{tpu_custom_call.1} parent=1 // pred_region
      %s26 = sadd.s32 0, 0
      %s28 = ssub.s32 256, 256
      %29 = vsyncadd [#allocation6], %s28
      %s30 = smul.addr %s26, 128
      %s31 = scalar_lea.hbm %s1, %s30
      %s32 = sshll.u32 [#allocation5], 4
      %s33 = int_to_ptr.vmem [resolvable:$true] %s32
      %38 = dma.hbm_to_vmem [thread:$0]  %s31, 256, %s33, [#allocation6], 128, 128, 8
    $region9: #{tpu_custom_call.1} parent=1 // pred_fallthru
      _
    // Predicated region
    $region10: #{tpu_custom_call.1} parent=1 // pred_check
      _
    $region11: #{tpu_custom_call.1} parent=1 // pred_check_branch
      %40 = sbr.rel (0) target = $region13
    $region12: #{tpu_custom_call.1} parent=1 // pred_region
      %41 = dma.done [#allocation4], 256
    $region13: #{tpu_custom_call.1} parent=1 // pred_fallthru
      _
    // Predicated region
    $region14: #{tpu_custom_call.1} parent=1 // pred_check
      _
    $region15: #{tpu_custom_call.1} parent=1 // pred_check_branch
      %43 = sbr.rel (0) target = $region17
    $region16: #{tpu_custom_call.1} parent=1 // pred_region
      %44 = dma.done [#allocation6], 256
    $region17: #{tpu_custom_call.1} parent=1 // pred_fallthru
      _
    %s45 = sadd.s32 0, 0
    %s46 = sadd.s32 0, 0
    %p47 = scmp.eq.s32.totalorder 0, 0
    // Predicated region
    $region18: #{tpu_custom_call.1} parent=1 // pred_check
      %p48 = pneg %p47
    $region19: #{tpu_custom_call.1} parent=1 // pred_check_branch
      %50 = sbr.rel (%p48) target = $region21
    $region20: #{tpu_custom_call.1} parent=1 // pred_region
      %51 = vst [vmem:[#allocation2] sm:$0x3] 0.0
    $region21: #{tpu_custom_call.1} parent=1 // pred_fallthru
      _
    %v52 = vld [vmem:[#allocation3] sm:$0xff]
    %v53 = vld [vmem:[#allocation3 + $0x8] sm:$0xff]
    %v54 = vld [vmem:[#allocation5] sm:$0xff]
    %v55 = vld [vmem:[#allocation5 + $0x8] sm:$0xff]
    %v56 = vsub.f32 %v52, %v54
    %v57 = vsub.f32 %v53, %v55
    %v58 = vmul.f32 %v56, %v56
    %v59 = vmul.f32 %v57, %v57
    %v60 = vld [vmem:[#allocation2] sm:$0x3]
    %v61 = vrot.slane %v58, 4
    %v62 = vadd.f32 %v58, %v61
    %v63 = vrot.slane %v62, 2
    %v64 = vadd.f32 %v62, %v63
    %v65 = vrot.slane %v64, 1
    %v66 = vadd.f32 %v64, %v65
    %v67 = vrot.slane %v59, 4
    %v68 = vadd.f32 %v59, %v67
    %v69 = vrot.slane %v68, 2
    %v70 = vadd.f32 %v68, %v69
    %v71 = vrot.slane %v70, 1
    %v72 = vadd.f32 %v70, %v71
    %vm75 = vcmask 1041409
    %v76 = vsel %vm75, %v72, %v66
    %v78 = vadd.f32 %v60, %v76
    %79 = vst [vmem:[#allocation2] sm:$0x3] %v78
    // Predicated region
    $region22: #{tpu_custom_call.1} parent=1 // pred_check
      %p80 = pneg %p47
    $region23: #{tpu_custom_call.1} parent=1 // pred_check_branch
      %82 = sbr.rel (%p80) target = $region25
    $region24: #{tpu_custom_call.1} parent=1 // pred_region
      %v83 = vld [vmem:[#allocation2] sm:$0x3]
      %vm84 = vcmask 1041408
      %v85 = vsel %vm84, %v83, 0.0
      %86 = vadd.xlane.f32.xlu0 %v85
      %v87 = vpop.xlane.xlu0 %86
      %vm88 = vcmask 1024
      %89 = vst.msk [vmem:[%s2] sm:$0x3] %vm88, %v87
    $region25: #{tpu_custom_call.1} parent=1 // pred_fallthru
      _
    // Predicated region
    $region26: #{tpu_custom_call.1} parent=1 // pred_check
      _
    $region27: #{tpu_custom_call.1} parent=1 // pred_check_branch
      %91 = sbr.rel (0) target = $region29
    $region28: #{tpu_custom_call.1} parent=1 // pred_region
      _
    $region29: #{tpu_custom_call.1} parent=1 // pred_fallthru
      _
    // Predicated region
    $region30: #{tpu_custom_call.1} parent=1 // pred_check
      _
    $region31: #{tpu_custom_call.1} parent=1 // pred_check_branch
      %93 = sbr.rel (0) target = $region33
    $region32: #{tpu_custom_call.1} parent=1 // pred_region
      _
    $region33: #{tpu_custom_call.1} parent=1 // pred_fallthru
      _
    %94 = vsyncpa [#allocation4], 1
    %95 = vsyncpa [#allocation6], 1

</llo_original>
